<compile_context>
chip_gen: v5e
topology: v5e:2x2
jax: 0.10.0
libtpu: 0.0.40
codegen_flags: <defaults>
</compile_context>

<pallas_src>
import jax
import jax.numpy as jnp
from jax import lax
from jax.experimental import pallas as pl
from jax.experimental.pallas import tpu as pltpu


# ------------------------- model hyper-parameters -------------------------
HIDDEN_DIM = 32
NUM_HEADS = 4
HEAD_DIM = HIDDEN_DIM // NUM_HEADS
SCALE = float(HEAD_DIM) ** 0.5

BATCH = 2
SEQ = 8


# ------------------------------ Pallas kernel ------------------------------
def causal_attn_kernel(
    x_ref,      # (B*S, H)
    mask_ref,   # (B*S, B*S) additive mask: 0 where allowed, -inf otherwise
    wqkv_ref,   # (H, 3H)  (1/scale already folded into the Q columns)
    bqkv_ref,   # (1, 3H)
    wo_ref,     # (H, H)
    bo_ref,     # (1, H)
    o_ref,      # (B*S, H)
):
    x = x_ref[...].astype(jnp.float32)          # explicit f32 compute dtype
    add_mask = mask_ref[...]                    # (B*S, B*S)
    wo = wo_ref[...]                            # (H, H)

    # Fused QKV projection: single MXU matmul + one bias add.
    qkv = jnp.dot(x, wqkv_ref[...], preferred_element_type=jnp.float32) + bqkv_ref[...]
    q = qkv[:, 0:HIDDEN_DIM]                    # already scaled by 1/sqrt(D)
    k = qkv[:, HIDDEN_DIM:2 * HIDDEN_DIM]
    v = qkv[:, 2 * HIDDEN_DIM:3 * HIDDEN_DIM]

    acc = jnp.zeros_like(x)                     # (B*S, H) f32 output accumulator
    for h in range(NUM_HEADS):                  # static tiny loop, all ops 2-D
        sl = slice(h * HEAD_DIM, (h + 1) * HEAD_DIM)
        qh = q[:, sl]                           # (B*S, D) lane slices (cheap)
        kh = k[:, sl]
        vh = v[:, sl]

        # scores = qh @ kh^T for all rows of all batches at once;
        # the additive mask enforces causality AND batch separation.
        s = lax.dot_general(qh, kh, (((1,), (1,)), ((), ())),
                            preferred_element_type=jnp.float32)
        s = s + add_mask                        # (B*S, B*S)

        # numerically-stable softmax, normalization deferred past p @ v
        m = jnp.max(s, axis=-1, keepdims=True)
        p = jnp.exp(s - m)
        l = jnp.sum(p, axis=-1, keepdims=True)

        ctx = jnp.dot(p, vh, preferred_element_type=jnp.float32)   # (B*S, D)
        ctx = ctx * pl.reciprocal(l)            # EUP reciprocal, (B*S, 1)

        # Output projection distributed over heads -> no lane concatenate.
        acc = acc + jnp.dot(ctx, wo[sl, :], preferred_element_type=jnp.float32)

    o_ref[...] = (acc + bo_ref[...]).astype(o_ref.dtype)


# ------------------------------ JAX wrapper ---------------------------------
def causal_self_attention(x, mask, params):
    """x: (B, S, H) f32; mask: (S, S) f32 with -inf at disallowed positions."""
    B, S, H = x.shape
    wq, bq, wk, bk, wv, bv, wo, bo = params

    # Fuse QKV and fold 1/scale into the Q projection.
    inv_scale = jnp.float32(1.0 / SCALE)
    w_qkv = jnp.concatenate([wq * inv_scale, wk, wv], axis=1)     # (H, 3H)
    b_qkv = jnp.concatenate([bq * inv_scale, bk, bv], axis=1)     # (1, 3H)

    # Additive mask over the flattened (B*S) sequence:
    #  - on the batch block-diagonal: -inf exactly where the user mask == -inf
    #    (matches PyTorch masked_fill semantics: finite mask values ignored),
    #  - off the block-diagonal: -inf (no cross-batch attention).
    neg_inf = jnp.float32(-jnp.inf)
    user_add = jnp.where(mask == -jnp.inf, neg_inf, jnp.float32(0.0))       # (S, S)
    bid = jnp.arange(B * S, dtype=jnp.int32) // S
    same_batch = bid[:, None] == bid[None, :]
    big_mask = jnp.where(same_batch, jnp.tile(user_add, (B, B)), neg_inf)   # (B*S, B*S)

    vmem = pl.BlockSpec(memory_space=pltpu.MemorySpace.VMEM)
    out2d = pl.pallas_call(
        causal_attn_kernel,
        out_shape=jax.ShapeDtypeStruct((B * S, H), x.dtype),
        in_specs=[vmem] * 6,
        out_specs=vmem,
    )(x.reshape(B * S, H), big_mask, w_qkv, b_qkv, wo, bo)
    return out2d.reshape(B, S, H)


# ------------------------- pure-JAX reference (check) -----------------------
def reference(x, mask, params):
    wq, bq, wk, bk, wv, bv, wo, bo = params
    B, S, H = x.shape
    q = (x @ wq + bq).reshape(B, S, NUM_HEADS, HEAD_DIM).transpose(0, 2, 1, 3)
    k = (x @ wk + bk).reshape(B, S, NUM_HEADS, HEAD_DIM).transpose(0, 2, 1, 3)
    v = (x @ wv + bv).reshape(B, S, NUM_HEADS, HEAD_DIM).transpose(0, 2, 1, 3)
    scores = jnp.einsum("bhqd,bhkd->bhqk", q, k) / SCALE
    scores = jnp.where(mask[None, None] == -jnp.inf, -jnp.inf, scores)
    attn = jax.nn.softmax(scores, axis=-1)
    ctx = jnp.einsum("bhqk,bhkd->bhqd", attn, v)
    ctx = ctx.transpose(0, 2, 1, 3).reshape(B, S, H)
    return ctx @ wo + bo


# --------------------------------- main --------------------------------------
if __name__ == "__main__":
    key = jax.random.PRNGKey(0)
    keys = jax.random.split(key, 9)

    x = jax.random.normal(keys[0], (BATCH, SEQ, HIDDEN_DIM), dtype=jnp.float32)

    # Deterministic parameter init (PyTorch Linear-like scale), stored as
    # (in, out) so the kernel computes x @ W + b.
    def lin(kw, kb):
        bound = 1.0 / (HIDDEN_DIM ** 0.5)
        w = jax.random.uniform(kw, (HIDDEN_DIM, HIDDEN_DIM), jnp.float32, -bound, bound)
        b = jax.random.uniform(kb, (1, HIDDEN_DIM), jnp.float32, -bound, bound)
        return w, b

    wq, bq = lin(keys[1], keys[2])
    wk, bk = lin(keys[3], keys[4])
    wv, bv = lin(keys[5], keys[6])
    wo, bo = lin(keys[7], keys[8])
    params = (wq, bq, wk, bk, wv, bv, wo, bo)

    # Causal mask: 0 on/below diagonal, -inf above (as the PyTorch code expects).
    causal = jnp.where(
        jnp.tril(jnp.ones((SEQ, SEQ), dtype=bool)), 0.0, -jnp.inf
    ).astype(jnp.float32)

    out = causal_self_attention(x, causal, params)
    out = jax.block_until_ready(out)

    ref = reference(x, causal, params)
    assert out.shape == (BATCH, SEQ, HIDDEN_DIM)
    assert jnp.allclose(out, ref, atol=2e-4, rtol=2e-4), "mismatch vs reference"

    print("KERNEL_OK")
</pallas_src>

<mosaic_0001>
module attributes {stable_mosaic.version = 11 : i64} {
  func.func @causal_attn_kernel(%arg0: memref<16x32xf32, #tpu.memory_space<vmem>>, %arg1: memref<16x16xf32, #tpu.memory_space<vmem>>, %arg2: memref<32x96xf32, #tpu.memory_space<vmem>>, %arg3: memref<1x96xf32, #tpu.memory_space<vmem>>, %arg4: memref<32x32xf32, #tpu.memory_space<vmem>>, %arg5: memref<1x32xf32, #tpu.memory_space<vmem>>, %arg6: memref<16x32xf32, #tpu.memory_space<vmem>>) attributes {dimension_semantics = [], scalar_prefetch = 0 : i64, scratch_operands = 0 : i64, tpu.core_type = #tpu.core_type<tc>} {
    %c0 = arith.constant 0 : index
    %c0_0 = arith.constant 0 : index
    %0 = vector.load %arg0[%c0, %c0_0] : memref<16x32xf32, #tpu.memory_space<vmem>>, vector<16x32xf32>
    %c0_1 = arith.constant 0 : index
    %c0_2 = arith.constant 0 : index
    %1 = vector.load %arg1[%c0_1, %c0_2] : memref<16x16xf32, #tpu.memory_space<vmem>>, vector<16x16xf32>
    %c0_3 = arith.constant 0 : index
    %c0_4 = arith.constant 0 : index
    %2 = vector.load %arg4[%c0_3, %c0_4] : memref<32x32xf32, #tpu.memory_space<vmem>>, vector<32x32xf32>
    %c0_5 = arith.constant 0 : index
    %c0_6 = arith.constant 0 : index
    %3 = vector.load %arg2[%c0_5, %c0_6] : memref<32x96xf32, #tpu.memory_space<vmem>>, vector<32x96xf32>
    %cst = arith.constant dense<0.000000e+00> : vector<16x96xf32>
    %4 = tpu.matmul %0, %3, %cst {dimension_numbers = #tpu.dot_dimension_numbers<[1], [0], [0], [1], [0, 0, 1, 1], [], []>} : vector<16x32xf32>, vector<32x96xf32>, vector<16x96xf32> -> vector<16x96xf32>
    %c0_7 = arith.constant 0 : index
    %c0_8 = arith.constant 0 : index
    %5 = vector.load %arg3[%c0_7, %c0_8] : memref<1x96xf32, #tpu.memory_space<vmem>>, vector<1x96xf32>
    %6 = vector.broadcast %5 : vector<1x96xf32> to vector<16x96xf32>
    %7 = arith.addf %4, %6 : vector<16x96xf32>
    %8 = vector.extract_strided_slice %7 {offsets = [0, 0], sizes = [16, 32], strides = [1, 1]} : vector<16x96xf32> to vector<16x32xf32>
    %9 = vector.extract_strided_slice %7 {offsets = [0, 32], sizes = [16, 32], strides = [1, 1]} : vector<16x96xf32> to vector<16x32xf32>
    %10 = vector.extract_strided_slice %7 {offsets = [0, 64], sizes = [16, 32], strides = [1, 1]} : vector<16x96xf32> to vector<16x32xf32>
    %cst_9 = arith.constant 0.000000e+00 : f32
    %11 = vector.broadcast %cst_9 : f32 to vector<16x32xf32>
    %12 = vector.extract_strided_slice %8 {offsets = [0, 0], sizes = [16, 8], strides = [1, 1]} : vector<16x32xf32> to vector<16x8xf32>
    %13 = vector.extract_strided_slice %9 {offsets = [0, 0], sizes = [16, 8], strides = [1, 1]} : vector<16x32xf32> to vector<16x8xf32>
    %14 = vector.extract_strided_slice %10 {offsets = [0, 0], sizes = [16, 8], strides = [1, 1]} : vector<16x32xf32> to vector<16x8xf32>
    %cst_10 = arith.constant dense<0.000000e+00> : vector<16x16xf32>
    %15 = tpu.matmul %12, %13, %cst_10 {dimension_numbers = #tpu.dot_dimension_numbers<[1], [1], [0], [0], [0, 0, 1, 0], [], []>} : vector<16x8xf32>, vector<16x8xf32>, vector<16x16xf32> -> vector<16x16xf32>
    %16 = arith.addf %15, %1 : vector<16x16xf32>
    %cst_11 = arith.constant dense<0xFF800000> : vector<16xf32>
    %17 = vector.multi_reduction <maximumf>, %16, %cst_11 [1] : vector<16x16xf32> to vector<16xf32>
    %18 = vector.shape_cast %17 : vector<16xf32> to vector<16x1xf32>
    %19 = vector.broadcast %18 : vector<16x1xf32> to vector<16x16xf32>
    %20 = arith.subf %16, %19 : vector<16x16xf32>
    %21 = math.exp %20 : vector<16x16xf32>
    %cst_12 = arith.constant dense<0.000000e+00> : vector<16xf32>
    %22 = vector.multi_reduction <add>, %21, %cst_12 [1] : vector<16x16xf32> to vector<16xf32>
    %23 = vector.shape_cast %22 : vector<16xf32> to vector<16x1xf32>
    %cst_13 = arith.constant dense<0.000000e+00> : vector<16x8xf32>
    %24 = tpu.matmul %21, %14, %cst_13 {dimension_numbers = #tpu.dot_dimension_numbers<[1], [0], [0], [1], [0, 0, 1, 1], [], []>} : vector<16x16xf32>, vector<16x8xf32>, vector<16x8xf32> -> vector<16x8xf32>
    %25 = tpu.reciprocal %23 : vector<16x1xf32> -> vector<16x1xf32>
    %26 = vector.broadcast %25 : vector<16x1xf32> to vector<16x8xf32>
    %27 = arith.mulf %24, %26 : vector<16x8xf32>
    %28 = vector.extract_strided_slice %2 {offsets = [0, 0], sizes = [8, 32], strides = [1, 1]} : vector<32x32xf32> to vector<8x32xf32>
    %cst_14 = arith.constant dense<0.000000e+00> : vector<16x32xf32>
    %29 = tpu.matmul %27, %28, %cst_14 {dimension_numbers = #tpu.dot_dimension_numbers<[1], [0], [0], [1], [0, 0, 1, 1], [], []>} : vector<16x8xf32>, vector<8x32xf32>, vector<16x32xf32> -> vector<16x32xf32>
    %30 = arith.addf %11, %29 : vector<16x32xf32>
    %31 = vector.extract_strided_slice %8 {offsets = [0, 8], sizes = [16, 8], strides = [1, 1]} : vector<16x32xf32> to vector<16x8xf32>
    %32 = vector.extract_strided_slice %9 {offsets = [0, 8], sizes = [16, 8], strides = [1, 1]} : vector<16x32xf32> to vector<16x8xf32>
    %33 = vector.extract_strided_slice %10 {offsets = [0, 8], sizes = [16, 8], strides = [1, 1]} : vector<16x32xf32> to vector<16x8xf32>
    %cst_15 = arith.constant dense<0.000000e+00> : vector<16x16xf32>
    %34 = tpu.matmul %31, %32, %cst_15 {dimension_numbers = #tpu.dot_dimension_numbers<[1], [1], [0], [0], [0, 0, 1, 0], [], []>} : vector<16x8xf32>, vector<16x8xf32>, vector<16x16xf32> -> vector<16x16xf32>
    %35 = arith.addf %34, %1 : vector<16x16xf32>
    %cst_16 = arith.constant dense<0xFF800000> : vector<16xf32>
    %36 = vector.multi_reduction <maximumf>, %35, %cst_16 [1] : vector<16x16xf32> to vector<16xf32>
    %37 = vector.shape_cast %36 : vector<16xf32> to vector<16x1xf32>
    %38 = vector.broadcast %37 : vector<16x1xf32> to vector<16x16xf32>
    %39 = arith.subf %35, %38 : vector<16x16xf32>
    %40 = math.exp %39 : vector<16x16xf32>
    %cst_17 = arith.constant dense<0.000000e+00> : vector<16xf32>
    %41 = vector.multi_reduction <add>, %40, %cst_17 [1] : vector<16x16xf32> to vector<16xf32>
    %42 = vector.shape_cast %41 : vector<16xf32> to vector<16x1xf32>
    %cst_18 = arith.constant dense<0.000000e+00> : vector<16x8xf32>
    %43 = tpu.matmul %40, %33, %cst_18 {dimension_numbers = #tpu.dot_dimension_numbers<[1], [0], [0], [1], [0, 0, 1, 1], [], []>} : vector<16x16xf32>, vector<16x8xf32>, vector<16x8xf32> -> vector<16x8xf32>
    %44 = tpu.reciprocal %42 : vector<16x1xf32> -> vector<16x1xf32>
    %45 = vector.broadcast %44 : vector<16x1xf32> to vector<16x8xf32>
    %46 = arith.mulf %43, %45 : vector<16x8xf32>
    %47 = vector.extract_strided_slice %2 {offsets = [8, 0], sizes = [8, 32], strides = [1, 1]} : vector<32x32xf32> to vector<8x32xf32>
    %cst_19 = arith.constant dense<0.000000e+00> : vector<16x32xf32>
    %48 = tpu.matmul %46, %47, %cst_19 {dimension_numbers = #tpu.dot_dimension_numbers<[1], [0], [0], [1], [0, 0, 1, 1], [], []>} : vector<16x8xf32>, vector<8x32xf32>, vector<16x32xf32> -> vector<16x32xf32>
    %49 = arith.addf %30, %48 : vector<16x32xf32>
    %50 = vector.extract_strided_slice %8 {offsets = [0, 16], sizes = [16, 8], strides = [1, 1]} : vector<16x32xf32> to vector<16x8xf32>
    %51 = vector.extract_strided_slice %9 {offsets = [0, 16], sizes = [16, 8], strides = [1, 1]} : vector<16x32xf32> to vector<16x8xf32>
    %52 = vector.extract_strided_slice %10 {offsets = [0, 16], sizes = [16, 8], strides = [1, 1]} : vector<16x32xf32> to vector<16x8xf32>
    %cst_20 = arith.constant dense<0.000000e+00> : vector<16x16xf32>
    %53 = tpu.matmul %50, %51, %cst_20 {dimension_numbers = #tpu.dot_dimension_numbers<[1], [1], [0], [0], [0, 0, 1, 0], [], []>} : vector<16x8xf32>, vector<16x8xf32>, vector<16x16xf32> -> vector<16x16xf32>
    %54 = arith.addf %53, %1 : vector<16x16xf32>
    %cst_21 = arith.constant dense<0xFF800000> : vector<16xf32>
    %55 = vector.multi_reduction <maximumf>, %54, %cst_21 [1] : vector<16x16xf32> to vector<16xf32>
    %56 = vector.shape_cast %55 : vector<16xf32> to vector<16x1xf32>
    %57 = vector.broadcast %56 : vector<16x1xf32> to vector<16x16xf32>
    %58 = arith.subf %54, %57 : vector<16x16xf32>
    %59 = math.exp %58 : vector<16x16xf32>
    %cst_22 = arith.constant dense<0.000000e+00> : vector<16xf32>
    %60 = vector.multi_reduction <add>, %59, %cst_22 [1] : vector<16x16xf32> to vector<16xf32>
    %61 = vector.shape_cast %60 : vector<16xf32> to vector<16x1xf32>
    %cst_23 = arith.constant dense<0.000000e+00> : vector<16x8xf32>
    %62 = tpu.matmul %59, %52, %cst_23 {dimension_numbers = #tpu.dot_dimension_numbers<[1], [0], [0], [1], [0, 0, 1, 1], [], []>} : vector<16x16xf32>, vector<16x8xf32>, vector<16x8xf32> -> vector<16x8xf32>
    %63 = tpu.reciprocal %61 : vector<16x1xf32> -> vector<16x1xf32>
    %64 = vector.broadcast %63 : vector<16x1xf32> to vector<16x8xf32>
    %65 = arith.mulf %62, %64 : vector<16x8xf32>
    %66 = vector.extract_strided_slice %2 {offsets = [16, 0], sizes = [8, 32], strides = [1, 1]} : vector<32x32xf32> to vector<8x32xf32>
    %cst_24 = arith.constant dense<0.000000e+00> : vector<16x32xf32>
    %67 = tpu.matmul %65, %66, %cst_24 {dimension_numbers = #tpu.dot_dimension_numbers<[1], [0], [0], [1], [0, 0, 1, 1], [], []>} : vector<16x8xf32>, vector<8x32xf32>, vector<16x32xf32> -> vector<16x32xf32>
    %68 = arith.addf %49, %67 : vector<16x32xf32>
    %69 = vector.extract_strided_slice %8 {offsets = [0, 24], sizes = [16, 8], strides = [1, 1]} : vector<16x32xf32> to vector<16x8xf32>
    %70 = vector.extract_strided_slice %9 {offsets = [0, 24], sizes = [16, 8], strides = [1, 1]} : vector<16x32xf32> to vector<16x8xf32>
    %71 = vector.extract_strided_slice %10 {offsets = [0, 24], sizes = [16, 8], strides = [1, 1]} : vector<16x32xf32> to vector<16x8xf32>
    %cst_25 = arith.constant dense<0.000000e+00> : vector<16x16xf32>
    %72 = tpu.matmul %69, %70, %cst_25 {dimension_numbers = #tpu.dot_dimension_numbers<[1], [1], [0], [0], [0, 0, 1, 0], [], []>} : vector<16x8xf32>, vector<16x8xf32>, vector<16x16xf32> -> vector<16x16xf32>
    %73 = arith.addf %72, %1 : vector<16x16xf32>
    %cst_26 = arith.constant dense<0xFF800000> : vector<16xf32>
    %74 = vector.multi_reduction <maximumf>, %73, %cst_26 [1] : vector<16x16xf32> to vector<16xf32>
    %75 = vector.shape_cast %74 : vector<16xf32> to vector<16x1xf32>
    %76 = vector.broadcast %75 : vector<16x1xf32> to vector<16x16xf32>
    %77 = arith.subf %73, %76 : vector<16x16xf32>
    %78 = math.exp %77 : vector<16x16xf32>
    %cst_27 = arith.constant dense<0.000000e+00> : vector<16xf32>
    %79 = vector.multi_reduction <add>, %78, %cst_27 [1] : vector<16x16xf32> to vector<16xf32>
    %80 = vector.shape_cast %79 : vector<16xf32> to vector<16x1xf32>
    %cst_28 = arith.constant dense<0.000000e+00> : vector<16x8xf32>
    %81 = tpu.matmul %78, %71, %cst_28 {dimension_numbers = #tpu.dot_dimension_numbers<[1], [0], [0], [1], [0, 0, 1, 1], [], []>} : vector<16x16xf32>, vector<16x8xf32>, vector<16x8xf32> -> vector<16x8xf32>
    %82 = tpu.reciprocal %80 : vector<16x1xf32> -> vector<16x1xf32>
    %83 = vector.broadcast %82 : vector<16x1xf32> to vector<16x8xf32>
    %84 = arith.mulf %81, %83 : vector<16x8xf32>
    %85 = vector.extract_strided_slice %2 {offsets = [24, 0], sizes = [8, 32], strides = [1, 1]} : vector<32x32xf32> to vector<8x32xf32>
    %cst_29 = arith.constant dense<0.000000e+00> : vector<16x32xf32>
    %86 = tpu.matmul %84, %85, %cst_29 {dimension_numbers = #tpu.dot_dimension_numbers<[1], [0], [0], [1], [0, 0, 1, 1], [], []>} : vector<16x8xf32>, vector<8x32xf32>, vector<16x32xf32> -> vector<16x32xf32>
    %87 = arith.addf %68, %86 : vector<16x32xf32>
    %c0_30 = arith.constant 0 : index
    %c0_31 = arith.constant 0 : index
    %88 = vector.load %arg5[%c0_30, %c0_31] : memref<1x32xf32, #tpu.memory_space<vmem>>, vector<1x32xf32>
    %89 = vector.broadcast %88 : vector<1x32xf32> to vector<16x32xf32>
    %90 = arith.addf %87, %89 : vector<16x32xf32>
    %c0_32 = arith.constant 0 : index
    %c0_33 = arith.constant 0 : index
    %91 = vector.load %arg6[%c0_32, %c0_33] : memref<16x32xf32, #tpu.memory_space<vmem>>, vector<16x32xf32>
    tpu.vector_store %arg6[%c0_32, %c0_33], %90 {strides = array<i32>} : memref<16x32xf32, #tpu.memory_space<vmem>>, vector<16x32xf32>,
    return
  }
}

</mosaic_0001>

<llo_original>
// kernel: tpu_custom_call.1
$region0: #{tpu_custom_call.1}
  #allocation0 [shape = 'u32[]', space=smem, size = 0x4, offset = 0x4, fixed_abs, tag = 'smem constant byte address 0x4 - core index']
  #allocation1 [shape = 'u32[72,128]{1,0:T(1,128)}', space=vmem, size = 0x9000, scoped, tag = 'internal scratch']
  %s0 = inlined_call_operand.hbm [shape: f32[16,32], index: 0, kind: input, shape index: {}]
  %s1 = inlined_call_operand.hbm [shape: f32[16,16], index: 1, kind: input, shape index: {}]
  %s2 = inlined_call_operand.hbm [shape: f32[32,96], index: 2, kind: input, shape index: {}]
  %s3 = inlined_call_operand.vmem [shape: f32[1,96], index: 3, kind: input, shape index: {}]
  %s4 = inlined_call_operand.hbm [shape: f32[32,32], index: 4, kind: input, shape index: {}]
  %s5 = inlined_call_operand.vmem [shape: f32[1,32], index: 5, kind: input, shape index: {}]
  %s6 = inlined_call_operand.hbm [shape: f32[16,32], index: 6, kind: output, shape index: {}]
  %s7 = sld [smem:[#allocation0]]
  $region50: #{tpu_custom_call.1} parent=0
    _
  %s9 = ssub.s32 1, %s7
  %s10 = scalar_select 0, %s9, %s7
  $region1: #{tpu_custom_call.1} parent=0
    #allocation2 [shape = 'u8[8192]{0}', space=vmem, size = 0x2000, scoped, tag = 'input window, operand 0, single buffered']
    #allocation3 [shape = 's32[1]{0}', space=sflag, size = 0x4, scoped, tag = 'scoped memory for tpu_custom_call.1']
    #allocation4 [shape = 's32[1]{0}', space=sflag, size = 0x4, scoped, tag = 'scoped memory for tpu_custom_call.1']
    #allocation5 [shape = 'u8[8192]{0}', space=vmem, size = 0x2000, scoped, tag = 'input window, operand 1, single buffered']
    #allocation6 [shape = 's32[1]{0}', space=sflag, size = 0x4, scoped, tag = 'scoped memory for tpu_custom_call.1']
    #allocation7 [shape = 'u8[16384]{0}', space=vmem, size = 0x4000, scoped, tag = 'input window, operand 2, single buffered']
    #allocation8 [shape = 'u8[16384]{0}', space=vmem, size = 0x4000, scoped, tag = 'input window, operand 4, single buffered']
    #allocation9 [shape = 's32[1]{0}', space=sflag, size = 0x4, scoped, tag = 'scoped memory for tpu_custom_call.1']
    #allocation10 [shape = 'u8[8192]{0}', space=vmem, size = 0x2000, scoped, tag = 'output window, operand 0, single buffered']
    %11 = vsyncpa [#allocation3], 0
    %12 = vsyncpa [#allocation6], 0
    %13 = vsyncpa [#allocation9], 0
    %14 = vsyncpa [#allocation4], 0
    // Predicated region
    $region2: #{tpu_custom_call.1} parent=1 // pred_check
      _
    $region3: #{tpu_custom_call.1} parent=1 // pred_check_branch
      %16 = sbr.rel (0) target = $region5
    $region4: #{tpu_custom_call.1} parent=1 // pred_region
      %18 = vsyncadd [#allocation3], 0
      %s19 = sshll.u32 %s0, 4
      %s20 = int_to_ptr.hbm [resolvable:$true] %s19
      %s21 = sshll.u32 [#allocation2], 4
      %s22 = int_to_ptr.vmem [resolvable:$true] %s21
      %27 = dma.hbm_to_vmem [thread:$0]  %s20, 256, %s22, [#allocation3], 128, 128, 8
    $region5: #{tpu_custom_call.1} parent=1 // pred_fallthru
      _
    // Predicated region
    $region6: #{tpu_custom_call.1} parent=1 // pred_check
      _
    $region7: #{tpu_custom_call.1} parent=1 // pred_check_branch
      %29 = sbr.rel (0) target = $region9
    $region8: #{tpu_custom_call.1} parent=1 // pred_region
      %31 = vsyncadd [#allocation6], 0
      %s32 = sshll.u32 %s1, 4
      %s33 = int_to_ptr.hbm [resolvable:$true] %s32
      %s34 = sshll.u32 [#allocation5], 4
      %s35 = int_to_ptr.vmem [resolvable:$true] %s34
      %40 = dma.hbm_to_vmem [thread:$0]  %s33, 256, %s35, [#allocation6], 128, 128, 8
    $region9: #{tpu_custom_call.1} parent=1 // pred_fallthru
      _
    // Predicated region
    $region10: #{tpu_custom_call.1} parent=1 // pred_check
      _
    $region11: #{tpu_custom_call.1} parent=1 // pred_check_branch
      %42 = sbr.rel (0) target = $region13
    $region12: #{tpu_custom_call.1} parent=1 // pred_region
      %44 = vsyncadd [#allocation6], 0
      %s45 = sshll.u32 %s2, 4
      %s46 = int_to_ptr.hbm [resolvable:$true] %s45
      %s47 = sshll.u32 [#allocation7], 4
      %s48 = int_to_ptr.vmem [resolvable:$true] %s47
      %53 = dma.hbm_to_vmem [thread:$0]  %s46, 512, %s48, [#allocation6], 128, 128, 8
    $region13: #{tpu_custom_call.1} parent=1 // pred_fallthru
      _
    // Predicated region
    $region14: #{tpu_custom_call.1} parent=1 // pred_check
      _
    $region15: #{tpu_custom_call.1} parent=1 // pred_check_branch
      %55 = sbr.rel (0) target = $region17
    $region16: #{tpu_custom_call.1} parent=1 // pred_region
      _
    $region17: #{tpu_custom_call.1} parent=1 // pred_fallthru
      _
    // Predicated region
    $region18: #{tpu_custom_call.1} parent=1 // pred_check
      _
    $region19: #{tpu_custom_call.1} parent=1 // pred_check_branch
      %57 = sbr.rel (0) target = $region21
    $region20: #{tpu_custom_call.1} parent=1 // pred_region
      %59 = vsyncadd [#allocation9], 0
      %s60 = sshll.u32 %s4, 4
      %s61 = int_to_ptr.hbm [resolvable:$true] %s60
      %s62 = sshll.u32 [#allocation8], 4
      %s63 = int_to_ptr.vmem [resolvable:$true] %s62
      %68 = dma.hbm_to_vmem [thread:$0]  %s61, 512, %s63, [#allocation9], 128, 128, 8
    $region21: #{tpu_custom_call.1} parent=1 // pred_fallthru
      _
    // Predicated region
    $region22: #{tpu_custom_call.1} parent=1 // pred_check
      _
    $region23: #{tpu_custom_call.1} parent=1 // pred_check_branch
      %70 = sbr.rel (0) target = $region25
    $region24: #{tpu_custom_call.1} parent=1 // pred_region
      _
    $region25: #{tpu_custom_call.1} parent=1 // pred_fallthru
      _
    // Predicated region
    $region26: #{tpu_custom_call.1} parent=1 // pred_check
      _
    $region27: #{tpu_custom_call.1} parent=1 // pred_check_branch
      %72 = sbr.rel (0) target = $region29
    $region28: #{tpu_custom_call.1} parent=1 // pred_region
      %74 = dma.done [#allocation3], 256
    $region29: #{tpu_custom_call.1} parent=1 // pred_fallthru
      _
    // Predicated region
    $region30: #{tpu_custom_call.1} parent=1 // pred_check
      _
    $region31: #{tpu_custom_call.1} parent=1 // pred_check_branch
      %76 = sbr.rel (0) target = $region33
    $region32: #{tpu_custom_call.1} parent=1 // pred_region
      %78 = dma.done [#allocation6], 256
    $region33: #{tpu_custom_call.1} parent=1 // pred_fallthru
      _
    // Predicated region
    $region34: #{tpu_custom_call.1} parent=1 // pred_check
      _
    $region35: #{tpu_custom_call.1} parent=1 // pred_check_branch
      %80 = sbr.rel (0) target = $region37
    $region36: #{tpu_custom_call.1} parent=1 // pred_region
      %82 = dma.done [#allocation6], 512
    $region37: #{tpu_custom_call.1} parent=1 // pred_fallthru
      _
    // Predicated region
    $region38: #{tpu_custom_call.1} parent=1 // pred_check
      _
    $region39: #{tpu_custom_call.1} parent=1 // pred_check_branch
      %84 = sbr.rel (0) target = $region41
    $region40: #{tpu_custom_call.1} parent=1 // pred_region
      %86 = dma.done [#allocation9], 512
    $region41: #{tpu_custom_call.1} parent=1 // pred_fallthru
      _
    %v87 = vld [vmem:[#allocation2] sm:$0xff]
    %v88 = vld [vmem:[#allocation2 + $0x8] sm:$0xff]
    %v89 = vld [vmem:[#allocation5] sm:$0xff]
    %v90 = vld [vmem:[#allocation5 + $0x8] sm:$0xff]
    %v91 = vld [vmem:[#allocation8] sm:$0xff]
    %v92 = vld [vmem:[#allocation8 + $0x8] sm:$0xff]
    %v93 = vld [vmem:[#allocation8 + $0x10] sm:$0xff]
    %v94 = vld [vmem:[#allocation8 + $0x18] sm:$0xff]
    %v95 = vld [vmem:[#allocation7] sm:$0xff]
    %v96 = vld [vmem:[#allocation7 + $0x8] sm:$0xff]
    %v97 = vld [vmem:[#allocation7 + $0x10] sm:$0xff]
    %v98 = vld [vmem:[#allocation7 + $0x18] sm:$0xff]
    %v99 = vld [vmem:[%s3] sm:$0x1]
    %v101 = vperm.slane %v99, 0
    %vm103 = vcmask 261120
    %v105 = vsel %vm103, %v87, 0
    %v108 = vsel %vm103, %v88, 0
    %110 = vmatpush.msra.mxu0 0.0
    %111 = vmatpush.msra.mxu0 0.0
    %112 = vmatpush.msra.mxu0 0.0
    %113 = vmatpush.msra.mxu0 0.0
    %114 = vmatpush.msra.mxu0 0.0
    %115 = vmatpush.msra.mxu0 0.0
    %116 = vmatpush.msra.mxu0 0.0
    %117 = vmatpush.msra.mxu0 0.0
    %118 = vmatpush.msra.mxu0 0.0
    %119 = vmatpush.msra.mxu0 0.0
    %120 = vmatpush.msra.mxu0 0.0
    %121 = vmatpush.msra.mxu0 0.0
    %122 = vmatpush.msra.mxu0 %v98
    %123 = vmatpush.msra.mxu0 %v97
    %124 = vmatpush.msra.mxu0 %v96
    %125 = vmatpush.msra.mxu0 %v95
    %126 = vmatmul.f32.gmra.mxu0 %v105
    %v127 = vpop.f32.mrf.mxu0
    %v128 = vadd.f32 %v101, %v127
    %129 = vmatmul.f32.gmra.mxu0 %v108
    %v130 = vpop.f32.mrf.mxu0
    %v131 = vadd.f32 %v101, %v130
    %132 = vdwg.mxu0
    %135 = vrot.lane.b32.xlu0 %v128, 96
    %v136 = vpop.permute.xlu0 %135
    %137 = vrot.lane.b32.xlu0 %v131, 96
    %v138 = vpop.permute.xlu0 %137
    %vm139 = vcmask 64512
    %v140 = vsel %vm139, %v128, 0
    %v142 = vsel %vm139, %v131, 0
    %v144 = vsel %vm139, %v136, 0
    %v146 = vsel %vm139, %v138, 0
    %148 = vmatpush.xpose.msra.mxu0 0.0
    %149 = vmatpush.xpose.msra.mxu0 0.0
    %150 = vmatpush.xpose.msra.mxu0 0.0
    %151 = vmatpush.xpose.msra.mxu0 0.0
    %152 = vmatpush.xpose.msra.mxu0 0.0
    %153 = vmatpush.xpose.msra.mxu0 0.0
    %154 = vmatpush.xpose.msra.mxu0 0.0
    %155 = vmatpush.xpose.msra.mxu0 0.0
    %156 = vmatpush.xpose.msra.mxu0 0.0
    %157 = vmatpush.xpose.msra.mxu0 0.0
    %158 = vmatpush.xpose.msra.mxu0 0.0
    %159 = vmatpush.xpose.msra.mxu0 0.0
    %160 = vmatpush.xpose.msra.mxu0 0.0
    %161 = vmatpush.xpose.msra.mxu0 0.0
    %162 = vmatpush.xpose.msra.mxu0 %v146
    %163 = vmatpush.xpose.msra.mxu0 %v144
    %164 = vmatmul.f32.gmra.mxu0 %v140
    %v165 = vpop.f32.mrf.mxu0
    %v166 = vadd.f32 %v89, %v165
    %167 = vmatmul.f32.gmra.mxu0 %v142
    %v168 = vpop.f32.mrf.mxu0
    %v169 = vadd.f32 %v90, %v168
    %170 = vdwg.mxu0
    %vm171 = vcmask 130048
    %v172 = vsel %vm171, %v166, -inf
    %173 = vmax.xlane.f32.xlu0 %v172
    %v174 = vpop.xlane.xlu0 %173
    %v175 = vsel %vm171, %v169, -inf
    %176 = vmax.xlane.f32.xlu0 %v175
    %v177 = vpop.xlane.xlu0 %176
    %v178 = vsub.f32 %v166, %v174
    %v179 = vsub.f32 %v169, %v177
    %v180 = vmul.f32 %v178, 1.442695
    %v181 = vpow.pop %v180
    %v182 = vmul.f32 %v179, 1.442695
    %v183 = vpow.pop %v182
    %v184 = vsel %vm171, %v181, 0.0
    %185 = vadd.xlane.f32.xlu0 %v184
    %v186 = vpop.xlane.xlu0 %185
    %v187 = vsel %vm171, %v183, 0.0
    %188 = vadd.xlane.f32.xlu0 %v187
    %v189 = vpop.xlane.xlu0 %188
    %190 = vrot.lane.b32.xlu0 %v128, 64
    %v191 = vpop.permute.xlu0 %190
    %192 = vrot.lane.b32.xlu0 %v131, 64
    %v193 = vpop.permute.xlu0 %192
    %v197 = vsel %vm171, %v181, 0
    %v200 = vsel %vm171, %v183, 0
    %202 = vmatpush.msra.mxu0 0.0
    %203 = vmatpush.msra.mxu0 0.0
    %204 = vmatpush.msra.mxu0 0.0
    %205 = vmatpush.msra.mxu0 0.0
    %206 = vmatpush.msra.mxu0 0.0
    %207 = vmatpush.msra.mxu0 0.0
    %208 = vmatpush.msra.mxu0 0.0
    %209 = vmatpush.msra.mxu0 0.0
    %210 = vmatpush.msra.mxu0 0.0
    %211 = vmatpush.msra.mxu0 0.0
    %212 = vmatpush.msra.mxu0 0.0
    %213 = vmatpush.msra.mxu0 0.0
    %214 = vmatpush.msra.mxu0 0.0
    %215 = vmatpush.msra.mxu0 0.0
    %216 = vmatpush.msra.mxu0 %v193
    %217 = vmatpush.msra.mxu0 %v191
    %218 = vmatmul.f32.gmra.mxu0 %v197
    %v219 = vpop.f32.mrf.mxu0
    %v220 = vadd.f32 0.0, %v219
    %221 = vmatmul.f32.gmra.mxu0 %v200
    %v222 = vpop.f32.mrf.mxu0
    %v223 = vadd.f32 0.0, %v222
    %224 = vdwg.mxu0
    %v225 = vrcp.pop %v186
    %v226 = vmul.f32 %v186, %v225
    %v227 = vsub.f32 1.0, %v226
    %v228 = vmul.f32 %v225, %v227
    %v229 = vadd.f32 %v225, %v228
    %vm230 = vweird.f32 %v186
    %vm231 = vweird.f32 %v225
    %vm232 = vmor %vm230, %vm231
    %v233 = vsel %vm232, %v225, %v229
    %v234 = vand.u32 2147483647, %v186
    %vm235 = vcmp.eq.f32.partialorder %v234, 8.507059e+37
    %v236 = vand.u32 %v186, 2147483648
    %v237 = vor.u32 1.1754944e-38, %v236
    %v238 = vsel %vm235, %v237, %v233
    %v239 = vrcp.pop %v189
    %v240 = vmul.f32 %v189, %v239
    %v241 = vsub.f32 1.0, %v240
    %v242 = vmul.f32 %v239, %v241
    %v243 = vadd.f32 %v239, %v242
    %vm244 = vweird.f32 %v189
    %vm245 = vweird.f32 %v239
    %vm246 = vmor %vm244, %vm245
    %v247 = vsel %vm246, %v239, %v243
    %v248 = vand.u32 2147483647, %v189
    %vm249 = vcmp.eq.f32.partialorder %v248, 8.507059e+37
    %v250 = vand.u32 %v189, 2147483648
    %v251 = vor.u32 1.1754944e-38, %v250
    %v252 = vsel %vm249, %v251, %v247
    %v253 = vmul.f32 %v220, %v238
    %v254 = vmul.f32 %v223, %v252
    %255 = vrot.lane.b32.xlu0 %v128, 120
    %v256 = vpop.permute.xlu0 %255
    %257 = vrot.lane.b32.xlu0 %v131, 120
    %v258 = vpop.permute.xlu0 %257
    %259 = vrot.lane.b32.xlu0 %v128, 88
    %v260 = vpop.permute.xlu0 %259
    %261 = vrot.lane.b32.xlu0 %v131, 88
    %v262 = vpop.permute.xlu0 %261
    %v263 = vsel %vm139, %v256, 0
    %v265 = vsel %vm139, %v258, 0
    %v267 = vsel %vm139, %v260, 0
    %v269 = vsel %vm139, %v262, 0
    %271 = vmatpush.xpose.msra.mxu0 0.0
    %272 = vmatpush.xpose.msra.mxu0 0.0
    %273 = vmatpush.xpose.msra.mxu0 0.0
    %274 = vmatpush.xpose.msra.mxu0 0.0
    %275 = vmatpush.xpose.msra.mxu0 0.0
    %276 = vmatpush.xpose.msra.mxu0 0.0
    %277 = vmatpush.xpose.msra.mxu0 0.0
    %278 = vmatpush.xpose.msra.mxu0 0.0
    %279 = vmatpush.xpose.msra.mxu0 0.0
    %280 = vmatpush.xpose.msra.mxu0 0.0
    %281 = vmatpush.xpose.msra.mxu0 0.0
    %282 = vmatpush.xpose.msra.mxu0 0.0
    %283 = vmatpush.xpose.msra.mxu0 0.0
    %284 = vmatpush.xpose.msra.mxu0 0.0
    %285 = vmatpush.xpose.msra.mxu0 %v269
    %286 = vmatpush.xpose.msra.mxu0 %v267
    %287 = vmatmul.f32.gmra.mxu0 %v263
    %v288 = vpop.f32.mrf.mxu0
    %v289 = vadd.f32 %v89, %v288
    %290 = vmatmul.f32.gmra.mxu0 %v265
    %v291 = vpop.f32.mrf.mxu0
    %v292 = vadd.f32 %v90, %v291
    %293 = vdwg.mxu0
    %v294 = vsel %vm171, %v289, -inf
    %295 = vmax.xlane.f32.xlu0 %v294
    %v296 = vpop.xlane.xlu0 %295
    %v297 = vsel %vm171, %v292, -inf
    %298 = vmax.xlane.f32.xlu0 %v297
    %v299 = vpop.xlane.xlu0 %298
    %v300 = vsub.f32 %v289, %v296
    %v301 = vsub.f32 %v292, %v299
    %v302 = vmul.f32 %v300, 1.442695
    %v303 = vpow.pop %v302
    %v304 = vmul.f32 %v301, 1.442695
    %v305 = vpow.pop %v304
    %v306 = vsel %vm171, %v303, 0.0
    %307 = vadd.xlane.f32.xlu0 %v306
    %v308 = vpop.xlane.xlu0 %307
    %v309 = vsel %vm171, %v305, 0.0
    %310 = vadd.xlane.f32.xlu0 %v309
    %v311 = vpop.xlane.xlu0 %310
    %312 = vrot.lane.b32.xlu0 %v128, 56
    %v313 = vpop.permute.xlu0 %312
    %314 = vrot.lane.b32.xlu0 %v131, 56
    %v315 = vpop.permute.xlu0 %314
    %v319 = vsel %vm171, %v303, 0
    %v322 = vsel %vm171, %v305, 0
    %324 = vmatpush.msra.mxu0 0.0
    %325 = vmatpush.msra.mxu0 0.0
    %326 = vmatpush.msra.mxu0 0.0
    %327 = vmatpush.msra.mxu0 0.0
    %328 = vmatpush.msra.mxu0 0.0
    %329 = vmatpush.msra.mxu0 0.0
    %330 = vmatpush.msra.mxu0 0.0
    %331 = vmatpush.msra.mxu0 0.0
    %332 = vmatpush.msra.mxu0 0.0
    %333 = vmatpush.msra.mxu0 0.0
    %334 = vmatpush.msra.mxu0 0.0
    %335 = vmatpush.msra.mxu0 0.0
    %336 = vmatpush.msra.mxu0 0.0
    %337 = vmatpush.msra.mxu0 0.0
    %338 = vmatpush.msra.mxu0 %v315
    %339 = vmatpush.msra.mxu0 %v313
    %340 = vmatmul.f32.gmra.mxu0 %v319
    %v341 = vpop.f32.mrf.mxu0
    %v342 = vadd.f32 0.0, %v341
    %343 = vmatmul.f32.gmra.mxu0 %v322
    %v344 = vpop.f32.mrf.mxu0
    %v345 = vadd.f32 0.0, %v344
    %346 = vdwg.mxu0
    %v347 = vrcp.pop %v308
    %v348 = vmul.f32 %v308, %v347
    %v349 = vsub.f32 1.0, %v348
    %v350 = vmul.f32 %v347, %v349
    %v351 = vadd.f32 %v347, %v350
    %vm352 = vweird.f32 %v308
    %vm353 = vweird.f32 %v347
    %vm354 = vmor %vm352, %vm353
    %v355 = vsel %vm354, %v347, %v351
    %v356 = vand.u32 2147483647, %v308
    %vm357 = vcmp.eq.f32.partialorder %v356, 8.507059e+37
    %v358 = vand.u32 %v308, 2147483648
    %v359 = vor.u32 1.1754944e-38, %v358
    %v360 = vsel %vm357, %v359, %v355
    %v361 = vrcp.pop %v311
    %v362 = vmul.f32 %v311, %v361
    %v363 = vsub.f32 1.0, %v362
    %v364 = vmul.f32 %v361, %v363
    %v365 = vadd.f32 %v361, %v364
    %vm366 = vweird.f32 %v311
    %vm367 = vweird.f32 %v361
    %vm368 = vmor %vm366, %vm367
    %v369 = vsel %vm368, %v361, %v365
    %v370 = vand.u32 2147483647, %v311
    %vm371 = vcmp.eq.f32.partialorder %v370, 8.507059e+37
    %v372 = vand.u32 %v311, 2147483648
    %v373 = vor.u32 1.1754944e-38, %v372
    %v374 = vsel %vm371, %v373, %v369
    %v375 = vmul.f32 %v342, %v360
    %v376 = vmul.f32 %v345, %v374
    %v378 = vsel %vm139, %v375, 0
    %v381 = vsel %vm139, %v376, 0
    %383 = vmatpush.msra.mxu0 0.0
    %384 = vmatpush.msra.mxu0 0.0
    %385 = vmatpush.msra.mxu0 0.0
    %386 = vmatpush.msra.mxu0 0.0
    %387 = vmatpush.msra.mxu0 0.0
    %388 = vmatpush.msra.mxu0 0.0
    %389 = vmatpush.msra.mxu0 0.0
    %390 = vmatpush.msra.mxu0 0.0
    %391 = vmatpush.msra.mxu0 0.0
    %392 = vmatpush.msra.mxu0 0.0
    %393 = vmatpush.msra.mxu0 0.0
    %394 = vmatpush.msra.mxu0 0.0
    %395 = vmatpush.msra.mxu0 0.0
    %396 = vmatpush.msra.mxu0 0.0
    %397 = vmatpush.msra.mxu0 0.0
    %398 = vmatpush.msra.mxu0 %v92
    %399 = vmatmul.f32.gmra.mxu0 %v378
    %v400 = vpop.f32.mrf.mxu0
    %v401 = vadd.f32 0.0, %v400
    %402 = vmatmul.f32.gmra.mxu0 %v381
    %v403 = vpop.f32.mrf.mxu0
    %v404 = vadd.f32 0.0, %v403
    %405 = vdwg.mxu0
    %v407 = vsel %vm139, %v253, 0
    %v410 = vsel %vm139, %v254, 0
    %412 = vmatpush.msra.mxu0 0.0
    %413 = vmatpush.msra.mxu0 0.0
    %414 = vmatpush.msra.mxu0 0.0
    %415 = vmatpush.msra.mxu0 0.0
    %416 = vmatpush.msra.mxu0 0.0
    %417 = vmatpush.msra.mxu0 0.0
    %418 = vmatpush.msra.mxu0 0.0
    %419 = vmatpush.msra.mxu0 0.0
    %420 = vmatpush.msra.mxu0 0.0
    %421 = vmatpush.msra.mxu0 0.0
    %422 = vmatpush.msra.mxu0 0.0
    %423 = vmatpush.msra.mxu0 0.0
    %424 = vmatpush.msra.mxu0 0.0
    %425 = vmatpush.msra.mxu0 0.0
    %426 = vmatpush.msra.mxu0 0.0
    %427 = vmatpush.msra.mxu0 %v91
    %428 = vmatmul.f32.gmra.mxu0 %v407
    %v429 = vpop.f32.mrf.mxu0
    %v430 = vadd.f32 %v401, %v429
    %431 = vmatmul.f32.gmra.mxu0 %v410
    %v432 = vpop.f32.mrf.mxu0
    %v433 = vadd.f32 %v404, %v432
    %434 = vdwg.mxu0
    %435 = vrot.lane.b32.xlu0 %v128, 112
    %v436 = vpop.permute.xlu0 %435
    %437 = vrot.lane.b32.xlu0 %v131, 112
    %v438 = vpop.permute.xlu0 %437
    %439 = vrot.lane.b32.xlu0 %v128, 80
    %v440 = vpop.permute.xlu0 %439
    %441 = vrot.lane.b32.xlu0 %v131, 80
    %v442 = vpop.permute.xlu0 %441
    %v443 = vsel %vm139, %v436, 0
    %v445 = vsel %vm139, %v438, 0
    %v447 = vsel %vm139, %v440, 0
    %v449 = vsel %vm139, %v442, 0
    %451 = vmatpush.xpose.msra.mxu0 0.0
    %452 = vmatpush.xpose.msra.mxu0 0.0
    %453 = vmatpush.xpose.msra.mxu0 0.0
    %454 = vmatpush.xpose.msra.mxu0 0.0
    %455 = vmatpush.xpose.msra.mxu0 0.0
    %456 = vmatpush.xpose.msra.mxu0 0.0
    %457 = vmatpush.xpose.msra.mxu0 0.0
    %458 = vmatpush.xpose.msra.mxu0 0.0
    %459 = vmatpush.xpose.msra.mxu0 0.0
    %460 = vmatpush.xpose.msra.mxu0 0.0
    %461 = vmatpush.xpose.msra.mxu0 0.0
    %462 = vmatpush.xpose.msra.mxu0 0.0
    %463 = vmatpush.xpose.msra.mxu0 0.0
    %464 = vmatpush.xpose.msra.mxu0 0.0
    %465 = vmatpush.xpose.msra.mxu0 %v449
    %466 = vmatpush.xpose.msra.mxu0 %v447
    %467 = vmatmul.f32.gmra.mxu0 %v443
    %v468 = vpop.f32.mrf.mxu0
    %v469 = vadd.f32 %v89, %v468
    %470 = vmatmul.f32.gmra.mxu0 %v445
    %v471 = vpop.f32.mrf.mxu0
    %v472 = vadd.f32 %v90, %v471
    %473 = vdwg.mxu0
    %v474 = vsel %vm171, %v469, -inf
    %475 = vmax.xlane.f32.xlu0 %v474
    %v476 = vpop.xlane.xlu0 %475
    %v477 = vsel %vm171, %v472, -inf
    %478 = vmax.xlane.f32.xlu0 %v477
    %v479 = vpop.xlane.xlu0 %478
    %v480 = vsub.f32 %v469, %v476
    %v481 = vsub.f32 %v472, %v479
    %v482 = vmul.f32 %v480, 1.442695
    %v483 = vpow.pop %v482
    %v484 = vmul.f32 %v481, 1.442695
    %v485 = vpow.pop %v484
    %v486 = vsel %vm171, %v483, 0.0
    %487 = vadd.xlane.f32.xlu0 %v486
    %v488 = vpop.xlane.xlu0 %487
    %v489 = vsel %vm171, %v485, 0.0
    %490 = vadd.xlane.f32.xlu0 %v489
    %v491 = vpop.xlane.xlu0 %490
    %492 = vrot.lane.b32.xlu0 %v128, 48
    %v493 = vpop.permute.xlu0 %492
    %494 = vrot.lane.b32.xlu0 %v131, 48
    %v495 = vpop.permute.xlu0 %494
    %v499 = vsel %vm171, %v483, 0
    %v502 = vsel %vm171, %v485, 0
    %504 = vmatpush.msra.mxu0 0.0
    %505 = vmatpush.msra.mxu0 0.0
    %506 = vmatpush.msra.mxu0 0.0
    %507 = vmatpush.msra.mxu0 0.0
    %508 = vmatpush.msra.mxu0 0.0
    %509 = vmatpush.msra.mxu0 0.0
    %510 = vmatpush.msra.mxu0 0.0
    %511 = vmatpush.msra.mxu0 0.0
    %512 = vmatpush.msra.mxu0 0.0
    %513 = vmatpush.msra.mxu0 0.0
    %514 = vmatpush.msra.mxu0 0.0
    %515 = vmatpush.msra.mxu0 0.0
    %516 = vmatpush.msra.mxu0 0.0
    %517 = vmatpush.msra.mxu0 0.0
    %518 = vmatpush.msra.mxu0 %v495
    %519 = vmatpush.msra.mxu0 %v493
    %520 = vmatmul.f32.gmra.mxu0 %v499
    %v521 = vpop.f32.mrf.mxu0
    %v522 = vadd.f32 0.0, %v521
    %523 = vmatmul.f32.gmra.mxu0 %v502
    %v524 = vpop.f32.mrf.mxu0
    %v525 = vadd.f32 0.0, %v524
    %526 = vdwg.mxu0
    %v527 = vrcp.pop %v488
    %v528 = vmul.f32 %v488, %v527
    %v529 = vsub.f32 1.0, %v528
    %v530 = vmul.f32 %v527, %v529
    %v531 = vadd.f32 %v527, %v530
    %vm532 = vweird.f32 %v488
    %vm533 = vweird.f32 %v527
    %vm534 = vmor %vm532, %vm533
    %v535 = vsel %vm534, %v527, %v531
    %v536 = vand.u32 2147483647, %v488
    %vm537 = vcmp.eq.f32.partialorder %v536, 8.507059e+37
    %v538 = vand.u32 %v488, 2147483648
    %v539 = vor.u32 1.1754944e-38, %v538
    %v540 = vsel %vm537, %v539, %v535
    %v541 = vrcp.pop %v491
    %v542 = vmul.f32 %v491, %v541
    %v543 = vsub.f32 1.0, %v542
    %v544 = vmul.f32 %v541, %v543
    %v545 = vadd.f32 %v541, %v544
    %vm546 = vweird.f32 %v491
    %vm547 = vweird.f32 %v541
    %vm548 = vmor %vm546, %vm547
    %v549 = vsel %vm548, %v541, %v545
    %v550 = vand.u32 2147483647, %v491
    %vm551 = vcmp.eq.f32.partialorder %v550, 8.507059e+37
    %v552 = vand.u32 %v491, 2147483648
    %v553 = vor.u32 1.1754944e-38, %v552
    %v554 = vsel %vm551, %v553, %v549
    %v555 = vmul.f32 %v522, %v540
    %v556 = vmul.f32 %v525, %v554
    %v558 = vsel %vm139, %v555, 0
    %v561 = vsel %vm139, %v556, 0
    %563 = vmatpush.msra.mxu0 0.0
    %564 = vmatpush.msra.mxu0 0.0
    %565 = vmatpush.msra.mxu0 0.0
    %566 = vmatpush.msra.mxu0 0.0
    %567 = vmatpush.msra.mxu0 0.0
    %568 = vmatpush.msra.mxu0 0.0
    %569 = vmatpush.msra.mxu0 0.0
    %570 = vmatpush.msra.mxu0 0.0
    %571 = vmatpush.msra.mxu0 0.0
    %572 = vmatpush.msra.mxu0 0.0
    %573 = vmatpush.msra.mxu0 0.0
    %574 = vmatpush.msra.mxu0 0.0
    %575 = vmatpush.msra.mxu0 0.0
    %576 = vmatpush.msra.mxu0 0.0
    %577 = vmatpush.msra.mxu0 0.0
    %578 = vmatpush.msra.mxu0 %v93
    %579 = vmatmul.f32.gmra.mxu0 %v558
    %v580 = vpop.f32.mrf.mxu0
    %v581 = vadd.f32 0.0, %v580
    %582 = vmatmul.f32.gmra.mxu0 %v561
    %v583 = vpop.f32.mrf.mxu0
    %v584 = vadd.f32 0.0, %v583
    %585 = vdwg.mxu0
    %v586 = vadd.f32 %v430, %v581
    %v587 = vadd.f32 %v433, %v584
    %588 = vrot.lane.b32.xlu0 %v128, 104
    %v589 = vpop.permute.xlu0 %588
    %590 = vrot.lane.b32.xlu0 %v131, 104
    %v591 = vpop.permute.xlu0 %590
    %592 = vrot.lane.b32.xlu0 %v128, 72
    %v593 = vpop.permute.xlu0 %592
    %594 = vrot.lane.b32.xlu0 %v131, 72
    %v595 = vpop.permute.xlu0 %594
    %v596 = vsel %vm139, %v589, 0
    %v598 = vsel %vm139, %v591, 0
    %v600 = vsel %vm139, %v593, 0
    %v602 = vsel %vm139, %v595, 0
    %604 = vmatpush.xpose.msra.mxu0 0.0
    %605 = vmatpush.xpose.msra.mxu0 0.0
    %606 = vmatpush.xpose.msra.mxu0 0.0
    %607 = vmatpush.xpose.msra.mxu0 0.0
    %608 = vmatpush.xpose.msra.mxu0 0.0
    %609 = vmatpush.xpose.msra.mxu0 0.0
    %610 = vmatpush.xpose.msra.mxu0 0.0
    %611 = vmatpush.xpose.msra.mxu0 0.0
    %612 = vmatpush.xpose.msra.mxu0 0.0
    %613 = vmatpush.xpose.msra.mxu0 0.0
    %614 = vmatpush.xpose.msra.mxu0 0.0
    %615 = vmatpush.xpose.msra.mxu0 0.0
    %616 = vmatpush.xpose.msra.mxu0 0.0
    %617 = vmatpush.xpose.msra.mxu0 0.0
    %618 = vmatpush.xpose.msra.mxu0 %v602
    %619 = vmatpush.xpose.msra.mxu0 %v600
    %620 = vmatmul.f32.gmra.mxu0 %v596
    %v621 = vpop.f32.mrf.mxu0
    %v622 = vadd.f32 %v89, %v621
    %623 = vmatmul.f32.gmra.mxu0 %v598
    %v624 = vpop.f32.mrf.mxu0
    %v625 = vadd.f32 %v90, %v624
    %626 = vdwg.mxu0
    %v627 = vsel %vm171, %v622, -inf
    %628 = vmax.xlane.f32.xlu0 %v627
    %v629 = vpop.xlane.xlu0 %628
    %v630 = vsel %vm171, %v625, -inf
    %631 = vmax.xlane.f32.xlu0 %v630
    %v632 = vpop.xlane.xlu0 %631
    %v633 = vsub.f32 %v622, %v629
    %v634 = vsub.f32 %v625, %v632
    %v635 = vmul.f32 %v633, 1.442695
    %v636 = vpow.pop %v635
    %v637 = vmul.f32 %v634, 1.442695
    %v638 = vpow.pop %v637
    %v639 = vsel %vm171, %v636, 0.0
    %640 = vadd.xlane.f32.xlu0 %v639
    %v641 = vpop.xlane.xlu0 %640
    %v642 = vsel %vm171, %v638, 0.0
    %643 = vadd.xlane.f32.xlu0 %v642
    %v644 = vpop.xlane.xlu0 %643
    %645 = vrot.lane.b32.xlu0 %v128, 40
    %v646 = vpop.permute.xlu0 %645
    %647 = vrot.lane.b32.xlu0 %v131, 40
    %v648 = vpop.permute.xlu0 %647
    %v652 = vsel %vm171, %v636, 0
    %v655 = vsel %vm171, %v638, 0
    %657 = vmatpush.msra.mxu0 0.0
    %658 = vmatpush.msra.mxu0 0.0
    %659 = vmatpush.msra.mxu0 0.0
    %660 = vmatpush.msra.mxu0 0.0
    %661 = vmatpush.msra.mxu0 0.0
    %662 = vmatpush.msra.mxu0 0.0
    %663 = vmatpush.msra.mxu0 0.0
    %664 = vmatpush.msra.mxu0 0.0
    %665 = vmatpush.msra.mxu0 0.0
    %666 = vmatpush.msra.mxu0 0.0
    %667 = vmatpush.msra.mxu0 0.0
    %668 = vmatpush.msra.mxu0 0.0
    %669 = vmatpush.msra.mxu0 0.0
    %670 = vmatpush.msra.mxu0 0.0
    %671 = vmatpush.msra.mxu0 %v648
    %672 = vmatpush.msra.mxu0 %v646
    %673 = vmatmul.f32.gmra.mxu0 %v652
    %v674 = vpop.f32.mrf.mxu0
    %v675 = vadd.f32 0.0, %v674
    %676 = vmatmul.f32.gmra.mxu0 %v655
    %v677 = vpop.f32.mrf.mxu0
    %v678 = vadd.f32 0.0, %v677
    %679 = vdwg.mxu0
    %v680 = vrcp.pop %v641
    %v681 = vmul.f32 %v641, %v680
    %v682 = vsub.f32 1.0, %v681
    %v683 = vmul.f32 %v680, %v682
    %v684 = vadd.f32 %v680, %v683
    %vm685 = vweird.f32 %v641
    %vm686 = vweird.f32 %v680
    %vm687 = vmor %vm685, %vm686
    %v688 = vsel %vm687, %v680, %v684
    %v689 = vand.u32 2147483647, %v641
    %vm690 = vcmp.eq.f32.partialorder %v689, 8.507059e+37
    %v691 = vand.u32 %v641, 2147483648
    %v692 = vor.u32 1.1754944e-38, %v691
    %v693 = vsel %vm690, %v692, %v688
    %v694 = vrcp.pop %v644
    %v695 = vmul.f32 %v644, %v694
    %v696 = vsub.f32 1.0, %v695
    %v697 = vmul.f32 %v694, %v696
    %v698 = vadd.f32 %v694, %v697
    %vm699 = vweird.f32 %v644
    %vm700 = vweird.f32 %v694
    %vm701 = vmor %vm699, %vm700
    %v702 = vsel %vm701, %v694, %v698
    %v703 = vand.u32 2147483647, %v644
    %vm704 = vcmp.eq.f32.partialorder %v703, 8.507059e+37
    %v705 = vand.u32 %v644, 2147483648
    %v706 = vor.u32 1.1754944e-38, %v705
    %v707 = vsel %vm704, %v706, %v702
    %v708 = vmul.f32 %v675, %v693
    %v709 = vmul.f32 %v678, %v707
    %v711 = vsel %vm139, %v708, 0
    %v714 = vsel %vm139, %v709, 0
    %716 = vmatpush.msra.mxu0 0.0
    %717 = vmatpush.msra.mxu0 0.0
    %718 = vmatpush.msra.mxu0 0.0
    %719 = vmatpush.msra.mxu0 0.0
    %720 = vmatpush.msra.mxu0 0.0
    %721 = vmatpush.msra.mxu0 0.0
    %722 = vmatpush.msra.mxu0 0.0
    %723 = vmatpush.msra.mxu0 0.0
    %724 = vmatpush.msra.mxu0 0.0
    %725 = vmatpush.msra.mxu0 0.0
    %726 = vmatpush.msra.mxu0 0.0
    %727 = vmatpush.msra.mxu0 0.0
    %728 = vmatpush.msra.mxu0 0.0
    %729 = vmatpush.msra.mxu0 0.0
    %730 = vmatpush.msra.mxu0 0.0
    %731 = vmatpush.msra.mxu0 %v94
    %732 = vmatmul.f32.gmra.mxu0 %v711
    %v733 = vpop.f32.mrf.mxu0
    %v734 = vadd.f32 0.0, %v733
    %735 = vmatmul.f32.gmra.mxu0 %v714
    %v736 = vpop.f32.mrf.mxu0
    %v737 = vadd.f32 0.0, %v736
    %738 = vdwg.mxu0
    %v739 = vadd.f32 %v586, %v734
    %v740 = vadd.f32 %v587, %v737
    %v741 = vld [vmem:[%s5] sm:$0x1]
    %v743 = vperm.slane %v741, 0
    %v745 = vadd.f32 %v739, %v743
    %v746 = vadd.f32 %v740, %v743
    %747 = vst.msk [vmem:[#allocation10] sm:$0xff] %vm103, %v745
    %748 = vst.msk [vmem:[#allocation10 + $0x8] sm:$0xff] %vm103, %v746
    // Predicated region
    $region42: #{tpu_custom_call.1} parent=1 // pred_check
      _
    $region43: #{tpu_custom_call.1} parent=1 // pred_check_branch
      %750 = sbr.rel (0) target = $region45
    $region44: #{tpu_custom_call.1} parent=1 // pred_region
      %752 = vsyncadd [#allocation4], 0
      %s753 = sshll.u32 [#allocation10], 4
      %s754 = int_to_ptr.vmem [resolvable:$true] %s753
      %s755 = sshll.u32 %s6, 4
      %s756 = int_to_ptr.hbm [resolvable:$true] %s755
      %761 = dma.vmem_to_hbm [thread:$0]  %s754, 256, %s756, [#allocation4], 128, 128, 8
    $region45: #{tpu_custom_call.1} parent=1 // pred_fallthru
      _
    // Predicated region
    $region46: #{tpu_custom_call.1} parent=1 // pred_check
      _
    $region47: #{tpu_custom_call.1} parent=1 // pred_check_branch
      %763 = sbr.rel (0) target = $region49
    $region48: #{tpu_custom_call.1} parent=1 // pred_region
      %765 = dma.done [#allocation4], 256
    $region49: #{tpu_custom_call.1} parent=1 // pred_fallthru
      _
    %766 = vsyncpa [#allocation3], 1
    %767 = vsyncpa [#allocation6], 1
    %768 = vsyncpa [#allocation9], 1
    %769 = vsyncpa [#allocation4], 1

</llo_original>
